<compile_context>
chip_gen: v7x
topology: tpu7x:2x2x1
jax: 0.10.0
libtpu: 0.0.40
codegen_flags: <defaults>
</compile_context>

<pallas_src>
import jax
import jax.numpy as jnp
from jax.experimental import pallas as pl
from jax.experimental.pallas import tpu as pltpu

_MIB = 1024 * 1024


# ----------------------------------------------------------------------------
# Kernel body
# ----------------------------------------------------------------------------
def _srelu_kernel(x_ref, p_ref, o_ref):
    """SReLU on one (tb, tu) tile; p_ref is the stacked (4, tu) param block."""
    x = x_ref[...]                                 # (tb, tu)
    # Each parameter row is consumed exactly once -> broadcast exactly once.
    d_l = x - p_ref[0:1, :]                        # x - t_left
    d_r = x - p_ref[2:3, :]                        # x - t_right
    # d_l <= 0  <=>  x <= t_left (any rounding/FTZ edge case yields the same
    # y_left, since the taken branch is then a_left * 0 == 0 either way).
    y_left = jnp.where(d_l <= 0.0, p_ref[1:2, :] * d_l, 0.0)
    y_right = jnp.where(d_r >= 0.0, p_ref[3:4, :] * d_r, 0.0)
    # Bit-exact rewrite of: where(|y_left| + |y_right| == 0, x, 0).
    center = jnp.where((y_left == 0.0) & (y_right == 0.0), x, 0.0)
    o_ref[...] = (y_left + y_right + center).astype(o_ref.dtype)


# ----------------------------------------------------------------------------
# Hardware probing (best effort, always falls back to safe defaults)
# ----------------------------------------------------------------------------
def _vmem_capacity_bytes():
    try:
        return int(pltpu.get_tpu_info().vmem_capacity_bytes)
    except Exception:
        pass
    try:
        kind = jax.devices()[0].device_kind.lower()
        return 64 * _MIB if "v7" in kind else 128 * _MIB
    except Exception:
        return 64 * _MIB  # conservative


def _num_tensorcores():
    try:
        info = pltpu.get_tpu_info()
        for attr in ("num_cores", "num_tensorcores", "core_count"):
            n = getattr(info, attr, None)
            if n:
                return int(n)
    except Exception:
        pass
    try:
        if "v7" in jax.devices()[0].device_kind.lower():
            return 2
    except Exception:
        pass
    return 1


# ----------------------------------------------------------------------------
# Tile selection
# ----------------------------------------------------------------------------
def _pick_lane_tile(u_padded, cap=8192):
    """Full padded width when it fits; else the largest 128-multiple divisor."""
    if u_padded <= cap:
        return u_padded
    t = cap - (cap % 128)
    while t >= 128:
        if u_padded % t == 0:
            return t
        t -= 128
    return 128


def _pick_tiles(B, u_padded, itemsize):
    vmem = _vmem_capacity_bytes()
    # Budget covers: 2x double-buffered (x + out) pipeline blocks (4 blocks)
    # plus ~10 full-block elementwise intermediates (assumed un-reused by the
    # compiler, to be safe) -> 14 live blocks.
    budget = min(int(vmem * 0.6), 80 * _MIB)
    live_blocks = 14
    max_block_bytes = max(budget // live_blocks, 64 * 1024)

    tu = _pick_lane_tile(u_padded)
    sub = max(8, 32 // itemsize)          # sublane multiple: 8 f32 / 16 bf16 / 32 i8

    tb = min(max_block_bytes // (tu * itemsize), 4096)
    if tb >= B:
        tb = B                            # full-extent block is always legal
    else:
        tb = max((tb // sub) * sub, sub)

    # Scoped-VMEM limit handed to the compiler (headroom over the budget,
    # well under physical: 64 MiB on v7x, 128 MiB on v5e/v6e).
    vmem_limit = int(min(vmem * 0.75, 100 * _MIB))
    return tb, tu, sub, vmem_limit


# ----------------------------------------------------------------------------
# Wrapper
# ----------------------------------------------------------------------------
def srelu(x, t_left, a_left, t_right, a_right):
    """x: (batch, units); per-unit params: (units,). Returns (batch, units)."""
    B, U = x.shape
    itemsize = x.dtype.itemsize

    # One stacked (4, U) parameter block -> single DMA, resident across batch.
    params = jnp.stack([t_left, a_left, t_right, a_right], axis=0).astype(x.dtype)

    # Lane-dense layout: pad the unit axis to a multiple of 128 so stores are
    # full-lane vst (not masked vst.msk).  Padded columns are sliced off.
    u_pad = max(128, ((U + 127) // 128) * 128)
    if u_pad != U:
        x_in = jnp.pad(x, ((0, 0), (0, u_pad - U)))
        params = jnp.pad(params, ((0, 0), (0, u_pad - U)))
    else:
        x_in = x

    tb, tu, sub, vmem_limit = _pick_tiles(B, u_pad, itemsize)
    grid_u = pl.cdiv(u_pad, tu)
    grid_b = pl.cdiv(B, tb)

    # Megacore split only when it can actually help: 2-TC chip (v7x) and an
    # otherwise (1, 1) grid with enough batch to split cleanly.
    if (grid_u == 1 and grid_b == 1 and _num_tensorcores() >= 2
            and B >= 2 * sub and B % (2 * sub) == 0):
        tb = B // 2
        grid_b = 2

    # Units-tile axis OUTER (slow), batch INNER (fast): the (4, tu) parameter
    # block index only depends on the outer axis, so it is not re-DMA'd
    # during the inner batch sweep.
    grid = (grid_u, grid_b)
    x_spec = pl.BlockSpec((tb, tu), lambda j, i: (i, j))
    p_spec = pl.BlockSpec((4, tu), lambda j, i: (0, j))
    o_spec = pl.BlockSpec((tb, tu), lambda j, i: (i, j))

    cost = pl.CostEstimate(
        flops=14 * B * U,
        transcendentals=0,
        bytes_accessed=2 * B * U * itemsize + 4 * U * itemsize,
    )

    out = pl.pallas_call(
        _srelu_kernel,
        out_shape=jax.ShapeDtypeStruct((B, u_pad), x.dtype),
        grid_spec=pltpu.PrefetchScalarGridSpec(
            num_scalar_prefetch=0,
            grid=grid,
            in_specs=[x_spec, p_spec],
            out_specs=o_spec,
        ),
        compiler_params=pltpu.CompilerParams(
            dimension_semantics=("parallel", "parallel"),
            vmem_limit_bytes=vmem_limit,
        ),
        cost_estimate=cost,
    )(x_in, params)

    if u_pad != U:
        out = out[:, :U]
    return out


# ----------------------------------------------------------------------------
# Pure-JAX reference (mirrors the PyTorch per-unit loop, vectorized)
# ----------------------------------------------------------------------------
def srelu_ref(x, t_left, a_left, t_right, a_right):
    tl = t_left[None, :]
    al = a_left[None, :]
    tr = t_right[None, :]
    ar = a_right[None, :]
    y_left = jnp.where(x <= tl, al * (x - tl), 0.0)
    y_right = jnp.where(x >= tr, ar * (x - tr), 0.0)
    ris = jnp.abs(y_left) + jnp.abs(y_right)
    center = jnp.where(ris == 0.0, x, 0.0)
    return y_left + y_right + center


if __name__ == "__main__":
    key = jax.random.PRNGKey(0)
    kx, kal, kar, kx2, k2al, k2ar = jax.random.split(key, 6)

    # Case 1: (N, C) = (8, 128) — lane-aligned units.
    batch, units = 8, 128
    t_left = jnp.zeros((units,), jnp.float32)
    a_left = jax.random.uniform(kal, (units,), jnp.float32)
    t_right = jnp.ones((units,), jnp.float32)
    a_right = jax.random.uniform(kar, (units,), jnp.float32)
    x = jax.random.normal(kx, (batch, units), jnp.float32) * 2.0

    out = jax.block_until_ready(srelu(x, t_left, a_left, t_right, a_right))
    exp = srelu_ref(x, t_left, a_left, t_right, a_right)
    assert out.shape == (batch, units)
    assert jnp.allclose(out, exp, atol=1e-6, rtol=1e-6)

    # Case 2: units not a multiple of 128 — exercises the lane-padding path.
    batch2, units2 = 4, 96
    t_left2 = jnp.zeros((units2,), jnp.float32)
    a_left2 = jax.random.uniform(k2al, (units2,), jnp.float32)
    t_right2 = jnp.ones((units2,), jnp.float32)
    a_right2 = jax.random.uniform(k2ar, (units2,), jnp.float32)
    x2 = jax.random.normal(kx2, (batch2, units2), jnp.float32) * 2.0

    out2 = jax.block_until_ready(srelu(x2, t_left2, a_left2, t_right2, a_right2))
    exp2 = srelu_ref(x2, t_left2, a_left2, t_right2, a_right2)
    assert out2.shape == (batch2, units2)
    assert jnp.allclose(out2, exp2, atol=1e-6, rtol=1e-6)

    print("KERNEL_OK")
</pallas_src>

<mosaic_0001>
module attributes {stable_mosaic.version = 11 : i64} {
  func.func @_srelu_kernel(%arg0: i32, %arg1: i32, %arg2: memref<8x128xf32, #tpu.memory_space<vmem>>, %arg3: memref<4x128xf32, #tpu.memory_space<vmem>>, %arg4: memref<8x128xf32, #tpu.memory_space<vmem>>) attributes {dimension_semantics = [#tpu.dimension_semantics<parallel>, #tpu.dimension_semantics<parallel>], iteration_bounds = array<i64: 1, 1>, scalar_prefetch = 0 : i64, scratch_operands = 0 : i64, tpu.core_type = #tpu.core_type<tc>, window_params = [{transform_indices = @transform_0, window_bounds = array<i64: 8, 128>}, {transform_indices = @transform_1, window_bounds = array<i64: 4, 128>}, {transform_indices = @transform_2, window_bounds = array<i64: 8, 128>}]} {
    %c0 = arith.constant 0 : index
    %c0_0 = arith.constant 0 : index
    %0 = vector.load %arg2[%c0, %c0_0] : memref<8x128xf32, #tpu.memory_space<vmem>>, vector<8x128xf32>
    %c0_1 = arith.constant 0 : index
    %c0_2 = arith.constant 0 : index
    %1 = vector.load %arg3[%c0_1, %c0_2] : memref<4x128xf32, #tpu.memory_space<vmem>>, vector<1x128xf32>
    %2 = vector.broadcast %1 : vector<1x128xf32> to vector<8x128xf32>
    %3 = arith.subf %0, %2 : vector<8x128xf32>
    %c2 = arith.constant 2 : index
    %c0_3 = arith.constant 0 : index
    %4 = vector.load %arg3[%c2, %c0_3] : memref<4x128xf32, #tpu.memory_space<vmem>>, vector<1x128xf32>
    %5 = vector.broadcast %4 : vector<1x128xf32> to vector<8x128xf32>
    %6 = arith.subf %0, %5 : vector<8x128xf32>
    %cst = arith.constant 0.000000e+00 : f32
    %7 = vector.broadcast %cst : f32 to vector<8x128xf32>
    %8 = arith.cmpf ole, %3, %7 : vector<8x128xf32>
    %c1 = arith.constant 1 : index
    %c0_4 = arith.constant 0 : index
    %9 = vector.load %arg3[%c1, %c0_4] : memref<4x128xf32, #tpu.memory_space<vmem>>, vector<1x128xf32>
    %10 = vector.broadcast %9 : vector<1x128xf32> to vector<8x128xf32>
    %11 = arith.mulf %10, %3 : vector<8x128xf32>
    %cst_5 = arith.constant 0.000000e+00 : f32
    %12 = vector.broadcast %cst_5 : f32 to vector<8x128xf32>
    %13 = arith.select %8, %11, %12 : vector<8x128xi1>, vector<8x128xf32>
    %cst_6 = arith.constant 0.000000e+00 : f32
    %14 = vector.broadcast %cst_6 : f32 to vector<8x128xf32>
    %15 = arith.cmpf oge, %6, %14 : vector<8x128xf32>
    %c3 = arith.constant 3 : index
    %c0_7 = arith.constant 0 : index
    %16 = vector.load %arg3[%c3, %c0_7] : memref<4x128xf32, #tpu.memory_space<vmem>>, vector<1x128xf32>
    %17 = vector.broadcast %16 : vector<1x128xf32> to vector<8x128xf32>
    %18 = arith.mulf %17, %6 : vector<8x128xf32>
    %cst_8 = arith.constant 0.000000e+00 : f32
    %19 = vector.broadcast %cst_8 : f32 to vector<8x128xf32>
    %20 = arith.select %15, %18, %19 : vector<8x128xi1>, vector<8x128xf32>
    %cst_9 = arith.constant 0.000000e+00 : f32
    %21 = vector.broadcast %cst_9 : f32 to vector<8x128xf32>
    %22 = arith.cmpf oeq, %13, %21 : vector<8x128xf32>
    %cst_10 = arith.constant 0.000000e+00 : f32
    %23 = vector.broadcast %cst_10 : f32 to vector<8x128xf32>
    %24 = arith.cmpf oeq, %20, %23 : vector<8x128xf32>
    %25 = arith.andi %22, %24 : vector<8x128xi1>
    %cst_11 = arith.constant 0.000000e+00 : f32
    %26 = vector.broadcast %cst_11 : f32 to vector<8x128xf32>
    %27 = arith.select %25, %0, %26 : vector<8x128xi1>, vector<8x128xf32>
    %28 = arith.addf %13, %20 : vector<8x128xf32>
    %29 = arith.addf %28, %27 : vector<8x128xf32>
    %c0_12 = arith.constant 0 : index
    %c0_13 = arith.constant 0 : index
    %30 = vector.load %arg4[%c0_12, %c0_13] : memref<8x128xf32, #tpu.memory_space<vmem>>, vector<8x128xf32>
    tpu.vector_store %arg4[%c0_12, %c0_13], %29 {strides = array<i32>} : memref<8x128xf32, #tpu.memory_space<vmem>>, vector<8x128xf32>,
    return
  }
  func.func @transform_0(%arg0: i32, %arg1: i32) -> (i32, i32) {
    %c0_i32 = arith.constant 0 : i32
    return %arg1, %arg0 : i32, i32
  }
  func.func @transform_1(%arg0: i32, %arg1: i32) -> (i32, i32) {
    %c0_i32 = arith.constant 0 : i32
    %c0_i32_0 = arith.constant 0 : i32
    return %c0_i32, %arg0 : i32, i32
  }
  func.func @transform_2(%arg0: i32, %arg1: i32) -> (i32, i32) {
    %c0_i32 = arith.constant 0 : i32
    return %arg1, %arg0 : i32, i32
  }
}

</mosaic_0001>

<llo_original>
// kernel: tpu_custom_call.1
$region0: #{tpu_custom_call.1}
  #allocation0 [shape = 'u32[]', space=smem, size = 0x4, offset = 0x4, fixed_abs, tag = 'smem constant byte address 0x4 - core index']
  #allocation1 [shape = 'u32[144,128]{1,0:T(1,128)}', space=vmem, size = 0x12000, scoped, tag = 'internal scratch']
  %s0 = inlined_call_operand.hbm [shape: f32[8,128], index: 0, kind: input, shape index: {}]
  %s1 = inlined_call_operand.hbm [shape: f32[4,128], index: 1, kind: input, shape index: {}]
  %s2 = inlined_call_operand.hbm [shape: f32[8,128], index: 2, kind: output, shape index: {}]
  %s3 = sld [smem:[#allocation0]]
  $region26: #{tpu_custom_call.1} parent=0
    _
  %s5 = ssub.s32 1, %s3
  %s6 = scalar_select 0, %s5, %s3
  $region1: #{tpu_custom_call.1} parent=0
    #allocation2 [shape = 'u8[4096]{0}', space=vmem, size = 0x1000, scoped, tag = 'input window, operand 0, single buffered']
    #allocation3 [shape = 's32[1]{0}', space=sflag, size = 0x4, scoped, tag = 'scoped memory for tpu_custom_call.1']
    #allocation4 [shape = 's32[1]{0}', space=sflag, size = 0x4, scoped, tag = 'scoped memory for tpu_custom_call.1']
    #allocation5 [shape = 'u8[2048]{0}', space=vmem, size = 0x800, scoped, tag = 'input window, operand 1, single buffered']
    #allocation6 [shape = 's32[1]{0}', space=sflag, size = 0x4, scoped, tag = 'scoped memory for tpu_custom_call.1']
    #allocation7 [shape = 'u8[4096]{0}', space=vmem, size = 0x1000, scoped, tag = 'output window, operand 0, single buffered']
    %7 = vsyncpa [#allocation3], 0
    %8 = vsyncpa [#allocation6], 0
    %9 = vsyncpa [#allocation4], 0
    // Predicated region
    $region2: #{tpu_custom_call.1} parent=1 // pred_check
      _
    $region3: #{tpu_custom_call.1} parent=1 // pred_check_branch
      %11 = sbr.rel (0) target = $region5
    $region4: #{tpu_custom_call.1} parent=1 // pred_region
      %s13 = ssub.s32 128, 128
      %14 = vsyncadd [#allocation3], %s13
      %s16 = sshll.u32 [#allocation2], 4
      %s17 = int_to_ptr.vmem [resolvable:$true] %s16
      %19 = dma.hbm_to_vmem [thread:$0]  %s0, 128, %s17, [#allocation3]
    $region5: #{tpu_custom_call.1} parent=1 // pred_fallthru
      _
    // Predicated region
    $region6: #{tpu_custom_call.1} parent=1 // pred_check
      _
    $region7: #{tpu_custom_call.1} parent=1 // pred_check_branch
      %21 = sbr.rel (0) target = $region9
    $region8: #{tpu_custom_call.1} parent=1 // pred_region
      %s23 = ssub.s32 64, 64
      %24 = vsyncadd [#allocation6], %s23
      %s26 = sshll.u32 [#allocation5], 4
      %s27 = int_to_ptr.vmem [resolvable:$true] %s26
      %29 = dma.hbm_to_vmem [thread:$0]  %s1, 64, %s27, [#allocation6]
    $region9: #{tpu_custom_call.1} parent=1 // pred_fallthru
      _
    // Predicated region
    $region10: #{tpu_custom_call.1} parent=1 // pred_check
      _
    $region11: #{tpu_custom_call.1} parent=1 // pred_check_branch
      %31 = sbr.rel (0) target = $region13
    $region12: #{tpu_custom_call.1} parent=1 // pred_region
      %32 = dma.done [#allocation3], 128
    $region13: #{tpu_custom_call.1} parent=1 // pred_fallthru
      _
    // Predicated region
    $region14: #{tpu_custom_call.1} parent=1 // pred_check
      _
    $region15: #{tpu_custom_call.1} parent=1 // pred_check_branch
      %34 = sbr.rel (0) target = $region17
    $region16: #{tpu_custom_call.1} parent=1 // pred_region
      %35 = dma.done [#allocation6], 64
    $region17: #{tpu_custom_call.1} parent=1 // pred_fallthru
      _
    %v36 = vld [vmem:[#allocation2] sm:$0xff]
    %v37 = vld [vmem:[#allocation5] sm:$0x1]
    %v38 = vlaneseq
    %v39 = vshrl.u32 %v38, 7
    %v40 = vsub.s32 0, %v39
    %v41 = vrot.slane %v37, %v40
    %v42 = vsub.f32 %v36, %v41
    %v43 = vld [vmem:[#allocation5 + $0x2] sm:$0x1]
    %v44 = vlaneseq
    %v45 = vshrl.u32 %v44, 7
    %v46 = vsub.s32 0, %v45
    %v47 = vrot.slane %v43, %v46
    %v48 = vsub.f32 %v36, %v47
    %vm49 = vcmp.le.f32.partialorder %v42, 0.0
    %v50 = vld [vmem:[#allocation5 + $0x1] sm:$0x1]
    %v51 = vlaneseq
    %v52 = vshrl.u32 %v51, 7
    %v53 = vsub.s32 0, %v52
    %v54 = vrot.slane %v50, %v53
    %v55 = vmul.f32 %v54, %v42
    %v56 = vsel %vm49, %v55, 0.0
    %vm57 = vcmp.ge.f32.partialorder %v48, 0.0
    %v58 = vld [vmem:[#allocation5 + $0x3] sm:$0x1]
    %v59 = vlaneseq
    %v60 = vshrl.u32 %v59, 7
    %v61 = vsub.s32 0, %v60
    %v62 = vrot.slane %v58, %v61
    %v63 = vmul.f32 %v62, %v48
    %v64 = vsel %vm57, %v63, 0.0
    %vm65 = vcmp.eq.f32.partialorder %v56, 0.0
    %vm66 = vcmp.eq.f32.partialorder %v64, 0.0
    %vm67 = vmand %vm65, %vm66
    %v68 = vsel %vm67, %v36, 0.0
    %v69 = vadd.f32 %v56, %v64
    %v70 = vadd.f32 %v69, %v68
    %71 = vst [vmem:[#allocation7] sm:$0xff] %v70
    // Predicated region
    $region18: #{tpu_custom_call.1} parent=1 // pred_check
      _
    $region19: #{tpu_custom_call.1} parent=1 // pred_check_branch
      %73 = sbr.rel (0) target = $region21
    $region20: #{tpu_custom_call.1} parent=1 // pred_region
      %s75 = ssub.s32 128, 128
      %76 = vsyncadd [#allocation4], %s75
      %s78 = sshll.u32 [#allocation7], 4
      %s79 = int_to_ptr.vmem [resolvable:$true] %s78
      %81 = dma.vmem_to_hbm [thread:$0]  %s79, 128, %s2, [#allocation4]
    $region21: #{tpu_custom_call.1} parent=1 // pred_fallthru
      _
    // Predicated region
    $region22: #{tpu_custom_call.1} parent=1 // pred_check
      _
    $region23: #{tpu_custom_call.1} parent=1 // pred_check_branch
      %83 = sbr.rel (0) target = $region25
    $region24: #{tpu_custom_call.1} parent=1 // pred_region
      %84 = dma.done [#allocation4], 128
    $region25: #{tpu_custom_call.1} parent=1 // pred_fallthru
      _
    %85 = vsyncpa [#allocation3], 1
    %86 = vsyncpa [#allocation6], 1
    %87 = vsyncpa [#allocation4], 1

</llo_original>
